<compile_context>
chip_gen: v6e
topology: v6e:2x2x1
jax: 0.10.0
libtpu: 0.0.40
codegen_flags: <defaults>
</compile_context>

<pallas_src>
import jax
import jax.numpy as jnp
from jax.experimental import pallas as pl
from jax.experimental.pallas import tpu as pltpu


def _fused_kernel(x_ref, w1t_ref, w2t_ref, o_ref):
    # x_ref:   (1, Cin,  TP)  one pixel tile of one batch image (channels x pixels)
    # w1t_ref: (Cmid, Cin)    first 1x1 conv-transpose weight, pre-transposed
    # w2t_ref: (Cout, Cmid)   second 1x1 conv-transpose weight, pre-transposed
    # o_ref:   (1, Cout, TP)
    x = x_ref[0]                                                        # (Cin, TP)

    # v1 = conv_transpose(x): per-pixel channel mix on the MXU.
    v1 = jnp.dot(w1t_ref[...], x, preferred_element_type=jnp.float32)  # (Cmid, TP)

    # tanh-GELU chain + outer tanh (exact op order of the PyTorch forward),
    # expressed without named full-tile temporaries.
    inner = jnp.tanh(0.7978845608028654 * (v1 + 0.044715 * (v1 * v1 * v1)))
    t = jnp.tanh((v1 * 0.5) * (inner + 1.0))                            # (Cmid, TP)

    # second 1x1 transposed conv (channel mix), bias=False
    o_ref[0] = jnp.dot(w2t_ref[...], t, preferred_element_type=jnp.float32)


def model_forward(x_nchw, w1, w2, *, tile_pixels=2048):
    """x_nchw: (N, Cin, H, W) f32;  w1: (Cin, Cmid);  w2: (Cmid, Cout).

    Returns (N, Cout, H-4, W-4) f32 == two padding=1 1x1 transposed convs with
    the tanh-GELU chain in between (crop folded into the wrapper on the output
    side).
    """
    n, cin, h, w = x_nchw.shape
    h_out, w_out = h - 4, w - 4
    assert h_out > 0 and w_out > 0, "input too small for two padding=1 crops"
    p = h * w

    # Free reshape of contiguous trailing dims — no interior-crop HBM pass.
    x_flat = x_nchw.reshape(n, cin, p)                                  # (N, Cin, P)

    # Lane-dense pixel tiles: TP must be a multiple of 128.
    if p % 128 != 0:
        p_pad = ((p + 127) // 128) * 128
        x_flat = jnp.pad(x_flat, ((0, 0), (0, 0), (0, p_pad - p)))
    else:
        p_pad = p
    tp = min(tile_pixels, p_pad)          # multiple of 128 by construction
    grid_p = pl.cdiv(p_pad, tp)           # tail tile (if any) is masked by Pallas

    cmid = w1.shape[1]
    cout = w2.shape[1]
    # Tiny weights: pre-transpose so the kernel does y = Wᵀ @ X directly.
    w1t = jnp.transpose(w1)                                             # (Cmid, Cin)
    w2t = jnp.transpose(w2)                                             # (Cout, Cmid)

    y = pl.pallas_call(
        _fused_kernel,
        out_shape=jax.ShapeDtypeStruct((n, cout, p_pad), jnp.float32),
        grid=(n, grid_p),
        in_specs=[
            pl.BlockSpec((1, cin, tp), lambda i, j: (i, 0, j)),         # pixel tile
            pl.BlockSpec((cmid, cin), lambda i, j: (0, 0)),             # weights resident
            pl.BlockSpec((cout, cmid), lambda i, j: (0, 0)),
        ],
        out_specs=pl.BlockSpec((1, cout, tp), lambda i, j: (i, 0, j)),
        compiler_params=pltpu.CompilerParams(
            dimension_semantics=("parallel", "parallel"),   # no reduction axis
            vmem_limit_bytes=32 * 1024 * 1024,              # tiles are <1 MiB; safe on v7x
        ),
    )(x_flat, w1t, w2t)

    # Crop on the output side (20 B/px) instead of the input side (44 B/px).
    y_full = y[:, :, :p].reshape(n, cout, h, w)
    return y_full[:, :, 2:h - 2, 2:w - 2]


def _reference(x_nchw, w1, w2):
    """Pure-JAX reference of the same forward pass (for a sanity check)."""
    hp = jax.lax.Precision.HIGHEST
    v1 = jnp.einsum("nchw,cm->nmhw", x_nchw, w1, precision=hp)
    v9 = (v1 * 0.5) * (jnp.tanh(0.7978845608028654 *
                                (v1 + 0.044715 * v1 * v1 * v1)) + 1.0)
    t = jnp.tanh(v9)
    v10 = jnp.einsum("nmhw,mo->nohw", t, w2, precision=hp)
    return v10[:, :, 2:-2, 2:-2]


if __name__ == "__main__":
    key = jax.random.PRNGKey(0)
    k_x, k_w1, k_w2 = jax.random.split(key, 3)

    # Module's sample input is randn(1, 11, 9, 4); spatial size enlarged so the
    # two padding=1 transposed convs leave a non-empty interior (W-4 > 0), and
    # batch=2 to exercise the batch grid axis.  16x16 => P=256 (lane-dense).
    x = jax.random.normal(k_x, (2, 11, 16, 16), dtype=jnp.float32)

    # conv_transpose = ConvTranspose2d(11, 10, 1, bias=False): weight[ci, co]
    w1 = jax.random.normal(k_w1, (11, 10), dtype=jnp.float32) * 0.1
    # TODO(synk): original module declares ConvTranspose2d(15, 5, 1) whose 15
    # input channels are inconsistent with v9's 10 channels (PyTorch forward
    # would raise); implemented as a 10 -> 5 channel mix instead.
    w2 = jax.random.normal(k_w2, (10, 5), dtype=jnp.float32) * 0.1

    out = model_forward(x, w1, w2)
    jax.block_until_ready(out)
    assert out.shape == (2, 5, 12, 12), out.shape

    ref = _reference(x, w1, w2)
    assert jnp.allclose(out, ref, atol=2e-3, rtol=2e-3), \
        float(jnp.max(jnp.abs(out - ref)))
    print("KERNEL_OK")
</pallas_src>

<mosaic_0001>
module attributes {stable_mosaic.version = 11 : i64} {
  func.func @_fused_kernel(%arg0: i32, %arg1: i32, %arg2: memref<1x11x256xf32, #tpu.memory_space<vmem>>, %arg3: memref<10x11xf32, #tpu.memory_space<vmem>>, %arg4: memref<5x10xf32, #tpu.memory_space<vmem>>, %arg5: memref<1x5x256xf32, #tpu.memory_space<vmem>>) attributes {dimension_semantics = [#tpu.dimension_semantics<parallel>, #tpu.dimension_semantics<parallel>], iteration_bounds = array<i64: 2, 1>, scalar_prefetch = 0 : i64, scratch_operands = 0 : i64, tpu.core_type = #tpu.core_type<tc>, window_params = [{transform_indices = @transform_0, window_bounds = array<i64: 1, 11, 256>}, {pipeline_mode = #tpu.pipeline_mode<synchronous>, transform_indices = @transform_1, window_bounds = array<i64: 10, 11>}, {pipeline_mode = #tpu.pipeline_mode<synchronous>, transform_indices = @transform_2, window_bounds = array<i64: 5, 10>}, {transform_indices = @transform_3, window_bounds = array<i64: 1, 5, 256>}]} {
    %c0 = arith.constant 0 : index
    %c0_0 = arith.constant 0 : index
    %c0_1 = arith.constant 0 : index
    %0 = vector.load %arg2[%c0, %c0_0, %c0_1] : memref<1x11x256xf32, #tpu.memory_space<vmem>>, vector<1x11x256xf32>
    %1 = vector.shape_cast %0 : vector<1x11x256xf32> to vector<11x256xf32>
    %c0_2 = arith.constant 0 : index
    %c0_3 = arith.constant 0 : index
    %2 = vector.load %arg3[%c0_2, %c0_3] : memref<10x11xf32, #tpu.memory_space<vmem>>, vector<10x11xf32>
    %cst = arith.constant dense<0.000000e+00> : vector<10x256xf32>
    %3 = tpu.matmul %2, %1, %cst {dimension_numbers = #tpu.dot_dimension_numbers<[1], [0], [0], [1], [0, 0, 1, 1], [], []>} : vector<10x11xf32>, vector<11x256xf32>, vector<10x256xf32> -> vector<10x256xf32>
    %4 = arith.mulf %3, %3 : vector<10x256xf32>
    %5 = arith.mulf %4, %3 : vector<10x256xf32>
    %cst_4 = arith.constant 4.471500e-02 : f32
    %6 = vector.broadcast %cst_4 : f32 to vector<10x256xf32>
    %7 = arith.mulf %6, %5 : vector<10x256xf32>
    %8 = arith.addf %3, %7 : vector<10x256xf32>
    %cst_5 = arith.constant 0.797884583 : f32
    %9 = vector.broadcast %cst_5 : f32 to vector<10x256xf32>
    %10 = arith.mulf %9, %8 : vector<10x256xf32>
    %11 = math.tanh %10 : vector<10x256xf32>
    %cst_6 = arith.constant 5.000000e-01 : f32
    %12 = vector.broadcast %cst_6 : f32 to vector<10x256xf32>
    %13 = arith.mulf %3, %12 : vector<10x256xf32>
    %cst_7 = arith.constant 1.000000e+00 : f32
    %14 = vector.broadcast %cst_7 : f32 to vector<10x256xf32>
    %15 = arith.addf %11, %14 : vector<10x256xf32>
    %16 = arith.mulf %13, %15 : vector<10x256xf32>
    %17 = math.tanh %16 : vector<10x256xf32>
    %c0_8 = arith.constant 0 : index
    %c0_9 = arith.constant 0 : index
    %18 = vector.load %arg4[%c0_8, %c0_9] : memref<5x10xf32, #tpu.memory_space<vmem>>, vector<5x10xf32>
    %cst_10 = arith.constant dense<0.000000e+00> : vector<5x256xf32>
    %19 = tpu.matmul %18, %17, %cst_10 {dimension_numbers = #tpu.dot_dimension_numbers<[1], [0], [0], [1], [0, 0, 1, 1], [], []>} : vector<5x10xf32>, vector<10x256xf32>, vector<5x256xf32> -> vector<5x256xf32>
    %c0_11 = arith.constant 0 : index
    %c0_12 = arith.constant 0 : index
    %c0_13 = arith.constant 0 : index
    %20 = vector.load %arg5[%c0_11, %c0_12, %c0_13] : memref<1x5x256xf32, #tpu.memory_space<vmem>>, vector<1x5x256xf32>
    %21 = vector.shape_cast %20 : vector<1x5x256xf32> to vector<5x256xf32>
    %22 = vector.shape_cast %19 : vector<5x256xf32> to vector<1x5x256xf32>
    tpu.vector_store %arg5[%c0_11, %c0_12, %c0_13], %22 {strides = array<i32>} : memref<1x5x256xf32, #tpu.memory_space<vmem>>, vector<1x5x256xf32>,
    return
  }
  func.func @transform_0(%arg0: i32, %arg1: i32) -> (i32, i32, i32) {
    %c0_i32 = arith.constant 0 : i32
    %c0_i32_0 = arith.constant 0 : i32
    return %arg0, %c0_i32, %arg1 : i32, i32, i32
  }
  func.func @transform_1(%arg0: i32, %arg1: i32) -> (i32, i32) {
    %c0_i32 = arith.constant 0 : i32
    %c0_i32_0 = arith.constant 0 : i32
    %c0_i32_1 = arith.constant 0 : i32
    return %c0_i32, %c0_i32_0 : i32, i32
  }
  func.func @transform_2(%arg0: i32, %arg1: i32) -> (i32, i32) {
    %c0_i32 = arith.constant 0 : i32
    %c0_i32_0 = arith.constant 0 : i32
    %c0_i32_1 = arith.constant 0 : i32
    return %c0_i32, %c0_i32_0 : i32, i32
  }
  func.func @transform_3(%arg0: i32, %arg1: i32) -> (i32, i32, i32) {
    %c0_i32 = arith.constant 0 : i32
    %c0_i32_0 = arith.constant 0 : i32
    return %arg0, %c0_i32, %arg1 : i32, i32, i32
  }
}

</mosaic_0001>

<llo_original>
// kernel: tpu_custom_call.1
$region0: #{tpu_custom_call.1}
  #allocation0 [shape = 'u32[]', space=smem, size = 0x4, offset = 0x4, fixed_abs, tag = 'smem constant byte address 0x4 - core index']
  #allocation1 [shape = 'u32[144,128]{1,0:T(1,128)}', space=vmem, size = 0x12000, scoped, tag = 'internal scratch']
  %s0 = inlined_call_operand.vmem [shape: f32[2,11,256], index: 0, kind: input, shape index: {}]
  %s1 = inlined_call_operand.vmem [shape: f32[10,11], index: 1, kind: input, shape index: {}]
  %s2 = inlined_call_operand.vmem [shape: f32[5,10], index: 2, kind: input, shape index: {}]
  %s3 = inlined_call_operand.vmem [shape: f32[2,5,256], index: 3, kind: output, shape index: {}]
  %s4 = sld [smem:[#allocation0]]
  $region45: #{tpu_custom_call.1} parent=0
    _
  %s6 = ssub.s32 1, %s4
  %s7 = scalar_select 0, %s6, %s4
  loop: start=0, step=1, limit=4
  $region2: #{tpu_custom_call.1} parent=0 // loop_pre_header
    _
  $region3: #{tpu_custom_call.1} parent=0 // loop_header
    %s9 = sphi 0, %s13
    %p10 = scmp.ge.s32.totalorder %s9, 4
    %s16 = sphi 0, %s28
    %s17 = sphi 0, %s24
    %s18 = sphi 0, %s16
    %s19 = sphi 0, %s17
    %s20 = sphi 0, %s18
    %s21 = sphi 0, %s19
    %s33 = sphi 0, %s35
    %s36 = sphi 0, %s33
    %s37 = sphi 0, %s36
    %s53 = sphi 0, %s37
    %s57 = sphi 0, %s57
    %s59 = sphi 0, %s57
    %s60 = sphi 0, %s59
    %s74 = sphi 0, %s60
    %s78 = sphi 0, %s78
    %s80 = sphi 0, %s78
    %s81 = sphi 0, %s80
    %s95 = sphi 0, %s81
    %s103 = sphi 0, %s105
    %s106 = sphi 0, %s103
    %s107 = sphi 0, %s106
    %s123 = sphi 0, %s107
  $region4: #{tpu_custom_call.1} parent=0 // loop_header_branch
    %12 = sbr.rel (%p10) target = $region8
  $region5: #{tpu_custom_call.1} parent=0 // loop_body
    %s14 = ssub.s32 %s9, 1
    %s15 = ssub.s32 %s9, 2
    %s22 = sadd.s32 1, %s17
    %p23 = scmp.ge.s32.totalorder %s22, 1
    %s24 = scalar_select %p23, 0, %s22
    %s25 = sadd.s32 1, %s16
    %s26 = scalar_select %p23, %s25, %s16
    %p27 = scmp.ge.s32.totalorder %s26, 2
    %s28 = scalar_select %p27, 0, %s26
    %s29 = ssub.s32 %s16, %s28
    %s30 = ssub.s32 %s17, %s24
    %s31 = sor.u32 %s29, %s30
    %p32 = scmp.eq.s32.totalorder %s31, 0
    %s34 = sadd.s32 %s33, 1
    %s35 = scalar_select %p32, %s33, %s34
    %p38 = pneg %p32
    %p39 = scmp.eq.s32.totalorder %s9, 1
    %p40 = por %p38, %p39
    %p41 = scmp.ne.s32.totalorder %s33, %s36
    %p42 = scmp.eq.s32.totalorder %s9, 0
    %p43 = por %p41, %p42
    %p44 = scmp.ne.s32.totalorder %s33, %s36
    %p45 = scmp.eq.s32.totalorder %s14, 1
    %p46 = por %p44, %p45
    %p47 = scmp.ne.s32.totalorder %s36, %s37
    %p48 = scmp.eq.s32.totalorder %s14, 0
    %p49 = por %p47, %p48
    %p50 = scmp.ne.s32.totalorder %s36, %s37
    %p51 = scmp.eq.s32.totalorder %s15, 1
    %p52 = por %p50, %p51
    %p54 = scmp.ne.s32.totalorder %s37, %s53
    %p55 = scmp.eq.s32.totalorder %s15, 0
    %p56 = por %p54, %p55
    %s58 = sadd.s32 %s57, 1
    %p61 = scmp.eq.s32.totalorder %s9, 1
    %p62 = scmp.ne.s32.totalorder %s57, %s59
    %p63 = scmp.eq.s32.totalorder %s9, 0
    %p64 = por %p62, %p63
    %p65 = scmp.ne.s32.totalorder %s57, %s59
    %p66 = scmp.eq.s32.totalorder %s14, 1
    %p67 = por %p65, %p66
    %p68 = scmp.ne.s32.totalorder %s59, %s60
    %p69 = scmp.eq.s32.totalorder %s14, 0
    %p70 = por %p68, %p69
    %p71 = scmp.ne.s32.totalorder %s59, %s60
    %p72 = scmp.eq.s32.totalorder %s15, 1
    %p73 = por %p71, %p72
    %p75 = scmp.ne.s32.totalorder %s60, %s74
    %p76 = scmp.eq.s32.totalorder %s15, 0
    %p77 = por %p75, %p76
    %s79 = sadd.s32 %s78, 1
    %p82 = scmp.eq.s32.totalorder %s9, 1
    %p83 = scmp.ne.s32.totalorder %s78, %s80
    %p84 = scmp.eq.s32.totalorder %s9, 0
    %p85 = por %p83, %p84
    %p86 = scmp.ne.s32.totalorder %s78, %s80
    %p87 = scmp.eq.s32.totalorder %s14, 1
    %p88 = por %p86, %p87
    %p89 = scmp.ne.s32.totalorder %s80, %s81
    %p90 = scmp.eq.s32.totalorder %s14, 0
    %p91 = por %p89, %p90
    %p92 = scmp.ne.s32.totalorder %s80, %s81
    %p93 = scmp.eq.s32.totalorder %s15, 1
    %p94 = por %p92, %p93
    %p96 = scmp.ne.s32.totalorder %s81, %s95
    %p97 = scmp.eq.s32.totalorder %s15, 0
    %p98 = por %p96, %p97
    %s99 = ssub.s32 %s16, %s28
    %s100 = ssub.s32 %s17, %s24
    %s101 = sor.u32 %s99, %s100
    %p102 = scmp.eq.s32.totalorder %s101, 0
    %s104 = sadd.s32 %s103, 1
    %s105 = scalar_select %p102, %s103, %s104
    %p108 = pneg %p102
    %p109 = scmp.eq.s32.totalorder %s9, 1
    %p110 = por %p108, %p109
    %p111 = scmp.ne.s32.totalorder %s103, %s106
    %p112 = scmp.eq.s32.totalorder %s9, 0
    %p113 = por %p111, %p112
    %p114 = scmp.ne.s32.totalorder %s103, %s106
    %p115 = scmp.eq.s32.totalorder %s14, 1
    %p116 = por %p114, %p115
    %p117 = scmp.ne.s32.totalorder %s106, %s107
    %p118 = scmp.eq.s32.totalorder %s14, 0
    %p119 = por %p117, %p118
    %p120 = scmp.ne.s32.totalorder %s106, %s107
    %p121 = scmp.eq.s32.totalorder %s15, 1
    %p122 = por %p120, %p121
    %p124 = scmp.ne.s32.totalorder %s107, %s123
    %p125 = scmp.eq.s32.totalorder %s15, 0
    %p126 = por %p124, %p125
    %p127 = scmp.le.s32.totalorder 1, %s9
    %p128 = scmp.lt.s32.totalorder %s9, 3
    %p129 = pnand %p127, %p128
    %p130 = pneg %p129
    // Predicated region
    $region9: #{tpu_custom_call.1} parent=5 // pred_check
      _
    $region10: #{tpu_custom_call.1} parent=5 // pred_check_branch
      %132 = sbr.rel (%p129) target = $region12
    $region11: #{tpu_custom_call.1} parent=5 // pred_region
      %s133 = ssub.s32 %s9, 1
      // Predicated region
      $region13: #{tpu_custom_call.1} parent=11 // pred_check
        %p134 = pneg %p70
      $region14: #{tpu_custom_call.1} parent=11 // pred_check_branch
        %136 = sbr.rel (%p134) target = $region16
      $region15: #{tpu_custom_call.1} parent=11 // pred_region
        _
      $region16: #{tpu_custom_call.1} parent=11 // pred_fallthru
        _
      // Predicated region
      $region17: #{tpu_custom_call.1} parent=11 // pred_check
        %p137 = pneg %p91
      $region18: #{tpu_custom_call.1} parent=11 // pred_check_branch
        %139 = sbr.rel (%p137) target = $region20
      $region19: #{tpu_custom_call.1} parent=11 // pred_region
        _
      $region20: #{tpu_custom_call.1} parent=11 // pred_fallthru
        _
    $region12: #{tpu_custom_call.1} parent=5 // pred_fallthru
      _
    %p140 = scmp.lt.s32.totalorder %s9, 2
    // Predicated region
    $region21: #{tpu_custom_call.1} parent=5 // pred_check
      %p141 = pneg %p140
    $region22: #{tpu_custom_call.1} parent=5 // pred_check_branch
      %143 = sbr.rel (%p141) target = $region24
    $region23: #{tpu_custom_call.1} parent=5 // pred_region
      // Predicated region
      $region25: #{tpu_custom_call.1} parent=23 // pred_check
        %p144 = pneg %p43
      $region26: #{tpu_custom_call.1} parent=23 // pred_check_branch
        %146 = sbr.rel (%p144) target = $region28
      $region27: #{tpu_custom_call.1} parent=23 // pred_region
        %s147 = smul.u32 2, %s17
        %p148 = scmp.lt.s32.totalorder %s16, 1
        %s149 = scalar_select %p148, %s16, 1
        %p150 = scmp.lt.s32.totalorder %s147, 1
        %s151 = scalar_select %p150, %s147, 1
        %s152 = smul.addr %s149, 4
        %s153 = sadd.s32 %s151, %s152
        %s154 = smul.addr %s153, 8
        %s155 = scalar_lea.vmem %s0, %s154
        %s156 = smul.u32 2, %s17
      $region28: #{tpu_custom_call.1} parent=23 // pred_fallthru
        _
    $region24: #{tpu_custom_call.1} parent=5 // pred_fallthru
      _
    %p157 = scmp.le.s32.totalorder 1, %s9
    %p158 = scmp.lt.s32.totalorder %s9, 3
    %p159 = pnand %p157, %p158
    %p160 = pneg %p159
    // Predicated region
    $region29: #{tpu_custom_call.1} parent=5 // pred_check
      _
    $region30: #{tpu_custom_call.1} parent=5 // pred_check_branch
      %162 = sbr.rel (%p159) target = $region32
    $region31: #{tpu_custom_call.1} parent=5 // pred_region
      %s163 = ssub.s32 %s9, 1
      %s164 = smul.u32 2, %s19
      %p165 = scmp.lt.s32.totalorder %s18, 1
      %s166 = scalar_select %p165, %s18, 1
      %p167 = scmp.lt.s32.totalorder %s164, 1
      %s168 = scalar_select %p167, %s164, 1
      %s169 = smul.addr %s166, 4
      %s170 = sadd.s32 %s168, %s169
      %s171 = smul.addr %s170, 8
      %s172 = scalar_lea.vmem %s0, %s171
      %p173 = pneg %p49
      %p174 = pneg %p46
      %p175 = pneg %p70
      %p176 = pneg %p67
      %p177 = pneg %p91
      %p178 = pneg %p88
      %p179 = pneg %p119
      %p180 = pneg %p116
      %s181 = smul.u32 2, %s19
      %p182 = scmp.lt.s32.totalorder %s18, 1
      %s183 = scalar_select %p182, %s18, 1
      %p184 = scmp.lt.s32.totalorder %s181, 1
      %s185 = scalar_select %p184, %s181, 1
      %s186 = smul.addr %s183, 2
      %s187 = sadd.s32 %s185, %s186
      %s188 = smul.addr %s187, 8
      %s189 = scalar_lea.vmem %s3, %s188
      %s190 = smul.u32 2, %s19
      %p191 = scmp.lt.s32.totalorder %s18, 1
      %s192 = scalar_select %p191, %s18, 1
      %p193 = scmp.lt.s32.totalorder %s190, 1
      %s194 = scalar_select %p193, %s190, 1
      %s195 = smul.addr %s192, 4
      %s196 = sadd.s32 %s194, %s195
      %s197 = smul.addr %s196, 8
      %s198 = scalar_lea.vmem %s0, %s197
      %s199 = smul.u32 2, %s19
      %s200 = smul.u32 2, %s19
      %p201 = scmp.lt.s32.totalorder %s18, 1
      %s202 = scalar_select %p201, %s18, 1
      %p203 = scmp.lt.s32.totalorder %s200, 1
      %s204 = scalar_select %p203, %s200, 1
      %s205 = smul.addr %s202, 2
      %s206 = sadd.s32 %s204, %s205
      %s207 = smul.addr %s206, 8
      %s208 = scalar_lea.vmem %s3, %s207
      %s209 = smul.u32 2, %s19
      %v210 = vld [vmem:[%s198] sm:$0xff]
      %v211 = vld [vmem:[%s198 + $0x8] sm:$0xff]
      %v212 = vld [vmem:[%s198 + $0x10] sm:$0x7]
      %v213 = vld [vmem:[%s198 + $0x18] sm:$0x7]
      %v214 = vld [vmem:[%s1] sm:$0xff]
      %v215 = vld [vmem:[%s1 + $0x8] sm:$0x3]
      %vm216 = vcmask 89088
      %v218 = vsel %vm216, %v214, 0
      %v221 = vsel %vm216, %v215, 0
      %vm223 = vcmask 1042432
      %v225 = vsel %vm223, %v212, 0
      %v228 = vsel %vm223, %v213, 0
      %230 = vmatprep.subr.mxu0 0.0
      %231 = vmatpush1.msra.mxu0 0.0
      %232 = vmatprep.subr.mxu0 0.0
      %233 = vmatpush1.msra.mxu0 0.0
      %234 = vmatprep.subr.mxu0 0.0
      %235 = vmatpush1.msra.mxu0 0.0
      %236 = vmatprep.subr.mxu0 0.0
      %237 = vmatpush1.msra.mxu0 0.0
      %238 = vmatprep.subr.mxu0 0.0
      %239 = vmatpush1.msra.mxu0 0.0
      %240 = vmatprep.subr.mxu0 0.0
      %241 = vmatpush1.msra.mxu0 0.0
      %242 = vmatprep.subr.mxu0 0.0
      %243 = vmatpush1.msra.mxu0 0.0
      %244 = vmatprep.subr.mxu0 0.0
      %245 = vmatpush1.msra.mxu0 0.0
      %246 = vmatprep.subr.mxu0 0.0
      %247 = vmatpush1.msra.mxu0 0.0
      %248 = vmatprep.subr.mxu0 0.0
      %249 = vmatpush1.msra.mxu0 0.0
      %250 = vmatprep.subr.mxu0 0.0
      %251 = vmatpush1.msra.mxu0 0.0
      %252 = vmatprep.subr.mxu0 0.0
      %253 = vmatpush1.msra.mxu0 0.0
      %254 = vmatprep.subr.mxu0 0.0
      %255 = vmatpush1.msra.mxu0 0.0
      %256 = vmatprep.subr.mxu0 0.0
      %257 = vmatpush1.msra.mxu0 0.0
      %258 = vmatprep.subr.mxu0 %v228
      %259 = vmatpush1.msra.mxu0 %v225
      %260 = vmatprep.subr.mxu0 %v211
      %261 = vmatpush1.msra.mxu0 %v210
      %262 = vmatprep.subr.mxu0 0.0
      %263 = vmatpush2.msra.mxu0 0.0
      %264 = vmatprep.subr.mxu0 0.0
      %265 = vmatpush2.msra.mxu0 0.0
      %266 = vmatprep.subr.mxu0 0.0
      %267 = vmatpush2.msra.mxu0 0.0
      %268 = vmatprep.subr.mxu0 0.0
      %269 = vmatpush2.msra.mxu0 0.0
      %270 = vmatprep.subr.mxu0 0.0
      %271 = vmatpush2.msra.mxu0 0.0
      %272 = vmatprep.subr.mxu0 0.0
      %273 = vmatpush2.msra.mxu0 0.0
      %274 = vmatprep.subr.mxu0 0.0
      %275 = vmatpush2.msra.mxu0 0.0
      %276 = vmatprep.subr.mxu0 0.0
      %277 = vmatpush2.msra.mxu0 0.0
      %278 = vmatprep.subr.mxu0 0.0
      %279 = vmatpush2.msra.mxu0 0.0
      %280 = vmatprep.subr.mxu0 0.0
      %281 = vmatpush2.msra.mxu0 0.0
      %282 = vmatprep.subr.mxu0 0.0
      %283 = vmatpush2.msra.mxu0 0.0
      %284 = vmatprep.subr.mxu0 0.0
      %285 = vmatpush2.msra.mxu0 0.0
      %286 = vmatprep.subr.mxu0 0.0
      %287 = vmatpush2.msra.mxu0 0.0
      %288 = vmatprep.subr.mxu0 0.0
      %289 = vmatpush2.msra.mxu0 0.0
      %290 = vmatprep.subr.mxu0 0.0
      %291 = vmatpush2.msra.mxu0 0.0
      %292 = vmatprep.subr.mxu0 0.0
      %293 = vmatpush2.msra.mxu0 0.0
      %294 = vmatprep.mubr.f32.mxu0 0.0
      %295 = vmatmul.mubr.f32.gmra.mxu0 %v218
      %v296 = vpop.f32.mrf.mxu0
      %v297 = vadd.f32 0.0, %v296
      %v298 = vpop.f32.mrf.mxu0
      %v299 = vadd.f32 0.0, %v298
      %300 = vmatprep.mubr.f32.mxu0 0.0
      %301 = vmatmul.mubr.f32.gmra.mxu0 %v221
      %v302 = vpop.f32.mrf.mxu0
      %v303 = vadd.f32 0.0, %v302
      %v304 = vpop.f32.mrf.mxu0
      %v305 = vadd.f32 0.0, %v304
      %306 = vdwg.mxu0
      %v307 = vmul.f32 %v297, %v297
      %v308 = vmul.f32 %v299, %v299
      %v309 = vmul.f32 %v303, %v303
      %v310 = vmul.f32 %v305, %v305
      %v311 = vmul.f32 %v307, %v297
      %v312 = vmul.f32 %v308, %v299
      %v313 = vmul.f32 %v309, %v303
      %v314 = vmul.f32 %v310, %v305
      %v315 = vmul.f32 %v311, 0.044715
      %v316 = vmul.f32 %v312, 0.044715
      %v317 = vmul.f32 %v313, 0.044715
      %v318 = vmul.f32 %v314, 0.044715
      %v319 = vadd.f32 %v297, %v315
      %v320 = vadd.f32 %v299, %v316
      %v321 = vadd.f32 %v303, %v317
      %v322 = vadd.f32 %v305, %v318
      %v323 = vmul.f32 %v319, 0.7978846
      %v324 = vmul.f32 %v320, 0.7978846
      %v325 = vmul.f32 %v321, 0.7978846
      %v326 = vmul.f32 %v322, 0.7978846
      %v327 = vtanh.pop %v323
      %v328 = vtanh.pop %v324
      %v329 = vtanh.pop %v325
      %v330 = vtanh.pop %v326
      %v331 = vmul.f32 %v297, 0.5
      %v332 = vmul.f32 %v299, 0.5
      %v333 = vmul.f32 %v303, 0.5
      %v334 = vmul.f32 %v305, 0.5
      %v335 = vadd.f32 %v327, 1.0
      %v336 = vadd.f32 %v328, 1.0
      %v337 = vadd.f32 %v329, 1.0
      %v338 = vadd.f32 %v330, 1.0
      %v339 = vmul.f32 %v331, %v335
      %v340 = vmul.f32 %v332, %v336
      %v341 = vmul.f32 %v333, %v337
      %v342 = vmul.f32 %v334, %v338
      %v343 = vtanh.pop %v339
      %v344 = vtanh.pop %v340
      %v345 = vtanh.pop %v341
      %v346 = vtanh.pop %v342
      %v347 = vld [vmem:[%s2] sm:$0x1f]
      %vm348 = vcmask 80896
      %v350 = vsel %vm348, %v347, 0
      %vm352 = vcmask 1041408
      %v354 = vsel %vm352, %v345, 0
      %v357 = vsel %vm352, %v346, 0
      %359 = vmatprep.subr.mxu0 0.0
      %360 = vmatpush1.msra.mxu0 0.0
      %361 = vmatprep.subr.mxu0 0.0
      %362 = vmatpush1.msra.mxu0 0.0
      %363 = vmatprep.subr.mxu0 0.0
      %364 = vmatpush1.msra.mxu0 0.0
      %365 = vmatprep.subr.mxu0 0.0
      %366 = vmatpush1.msra.mxu0 0.0
      %367 = vmatprep.subr.mxu0 0.0
      %368 = vmatpush1.msra.mxu0 0.0
      %369 = vmatprep.subr.mxu0 0.0
      %370 = vmatpush1.msra.mxu0 0.0
      %371 = vmatprep.subr.mxu0 0.0
      %372 = vmatpush1.msra.mxu0 0.0
      %373 = vmatprep.subr.mxu0 0.0
      %374 = vmatpush1.msra.mxu0 0.0
      %375 = vmatprep.subr.mxu0 0.0
      %376 = vmatpush1.msra.mxu0 0.0
      %377 = vmatprep.subr.mxu0 0.0
      %378 = vmatpush1.msra.mxu0 0.0
      %379 = vmatprep.subr.mxu0 0.0
      %380 = vmatpush1.msra.mxu0 0.0
      %381 = vmatprep.subr.mxu0 0.0
      %382 = vmatpush1.msra.mxu0 0.0
      %383 = vmatprep.subr.mxu0 0.0
      %384 = vmatpush1.msra.mxu0 0.0
      %385 = vmatprep.subr.mxu0 0.0
      %386 = vmatpush1.msra.mxu0 0.0
      %387 = vmatprep.subr.mxu0 %v357
      %388 = vmatpush1.msra.mxu0 %v354
      %389 = vmatprep.subr.mxu0 %v344
      %390 = vmatpush1.msra.mxu0 %v343
      %391 = vmatprep.subr.mxu0 0.0
      %392 = vmatpush2.msra.mxu0 0.0
      %393 = vmatprep.subr.mxu0 0.0
      %394 = vmatpush2.msra.mxu0 0.0
      %395 = vmatprep.subr.mxu0 0.0
      %396 = vmatpush2.msra.mxu0 0.0
      %397 = vmatprep.subr.mxu0 0.0
      %398 = vmatpush2.msra.mxu0 0.0
      %399 = vmatprep.subr.mxu0 0.0
      %400 = vmatpush2.msra.mxu0 0.0
      %401 = vmatprep.subr.mxu0 0.0
      %402 = vmatpush2.msra.mxu0 0.0
      %403 = vmatprep.subr.mxu0 0.0
      %404 = vmatpush2.msra.mxu0 0.0
      %405 = vmatprep.subr.mxu0 0.0
      %406 = vmatpush2.msra.mxu0 0.0
      %407 = vmatprep.subr.mxu0 0.0
      %408 = vmatpush2.msra.mxu0 0.0
      %409 = vmatprep.subr.mxu0 0.0
      %410 = vmatpush2.msra.mxu0 0.0
      %411 = vmatprep.subr.mxu0 0.0
      %412 = vmatpush2.msra.mxu0 0.0
      %413 = vmatprep.subr.mxu0 0.0
      %414 = vmatpush2.msra.mxu0 0.0
      %415 = vmatprep.subr.mxu0 0.0
      %416 = vmatpush2.msra.mxu0 0.0
      %417 = vmatprep.subr.mxu0 0.0
      %418 = vmatpush2.msra.mxu0 0.0
      %419 = vmatprep.subr.mxu0 0.0
      %420 = vmatpush2.msra.mxu0 0.0
      %421 = vmatprep.subr.mxu0 0.0
      %422 = vmatpush2.msra.mxu0 0.0
      %423 = vmatprep.mubr.f32.mxu0 0.0
      %424 = vmatmul.mubr.f32.gmra.mxu0 %v350
      %v425 = vpop.f32.mrf.mxu0
      %v426 = vadd.f32 0.0, %v425
      %v427 = vpop.f32.mrf.mxu0
      %v428 = vadd.f32 0.0, %v427
      %429 = vdwg.mxu0
      %430 = vst [vmem:[%s208] sm:$0x1f] %v426
      %431 = vst [vmem:[%s208 + $0x8] sm:$0x1f] %v428
      %s432 = smul.u32 2, %s19
      %p433 = scmp.lt.s32.totalorder %s18, 1
      %s434 = scalar_select %p433, %s18, 1
      %p435 = scmp.lt.s32.totalorder %s432, 1
      %s436 = scalar_select %p435, %s432, 1
      %s437 = smul.addr %s434, 2
      %s438 = sadd.s32 %s436, %s437
      %s439 = smul.addr %s438, 8
      %s440 = scalar_lea.vmem %s3, %s439
      // Predicated region
      $region33: #{tpu_custom_call.1} parent=31 // pred_check
        %p441 = pneg %p116
      $region34: #{tpu_custom_call.1} parent=31 // pred_check_branch
        %443 = sbr.rel (%p441) target = $region36
      $region35: #{tpu_custom_call.1} parent=31 // pred_region
        %s444 = smul.u32 2, %s19
      $region36: #{tpu_custom_call.1} parent=31 // pred_fallthru
        _
    $region32: #{tpu_custom_call.1} parent=5 // pred_fallthru
      _
    %p445 = scmp.le.s32.totalorder 2, %s9
    // Predicated region
    $region37: #{tpu_custom_call.1} parent=5 // pred_check
      %p446 = pneg %p445
    $region38: #{tpu_custom_call.1} parent=5 // pred_check_branch
      %448 = sbr.rel (%p446) target = $region40
    $region39: #{tpu_custom_call.1} parent=5 // pred_region
      %s449 = ssub.s32 %s9, 2
      // Predicated region
      $region41: #{tpu_custom_call.1} parent=39 // pred_check
        %p450 = pneg %p122
      $region42: #{tpu_custom_call.1} parent=39 // pred_check_branch
        %452 = sbr.rel (%p450) target = $region44
      $region43: #{tpu_custom_call.1} parent=39 // pred_region
        %s453 = smul.u32 2, %s21
        %p454 = scmp.lt.s32.totalorder %s20, 1
        %s455 = scalar_select %p454, %s20, 1
        %p456 = scmp.lt.s32.totalorder %s453, 1
        %s457 = scalar_select %p456, %s453, 1
        %s458 = smul.addr %s455, 2
        %s459 = sadd.s32 %s457, %s458
        %s460 = smul.addr %s459, 8
        %s461 = scalar_lea.vmem %s3, %s460
      $region44: #{tpu_custom_call.1} parent=39 // pred_fallthru
        _
    $region40: #{tpu_custom_call.1} parent=5 // pred_fallthru
      _
  $region6: #{tpu_custom_call.1} parent=0 // loop_footer
    %s13 = sadd.s32 1, %s9
  $region7: #{tpu_custom_call.1} parent=0 // loop_footer_branch
    %8 = sbr.rel target = $region3
  $region8: #{tpu_custom_call.1} parent=0 // loop_exit
    _

</llo_original>
